<compile_context>
chip_gen: v7x
topology: tpu7x:2x2x1
jax: 0.10.0
libtpu: 0.0.40
codegen_flags: <defaults>
</compile_context>

<pallas_src>
import functools
import math
from typing import NamedTuple

import jax
import jax.numpy as jnp
from jax.experimental import pallas as pl
from jax.experimental.pallas import tpu as pltpu


def _round_up(n: int, m: int) -> int:
    return ((n + m - 1) // m) * m


def _gelu_exact(x):
    # nn.GELU() default (approximate='none'): 0.5 * x * (1 + erf(x / sqrt(2)))
    return 0.5 * x * (1.0 + jax.lax.erf(x * (1.0 / math.sqrt(2.0))))


class _Layout(NamedTuple):
    B: int; Brb: int; E: int; S: int; T2: int; C: int
    R: int; R_PAD: int; KW: int; KW_PAD: int; NCOLS: int
    W13_OFF: int; W2_OFF: int; W4_OFF: int; B24_OFF: int; RED_OFF: int
    TOTAL_ROWS: int


def make_layout(*, batch, enc_in, seq_len, pred_len, concept_dim,
                recent_batch_size=1):
    B, E, S, C, Brb = batch, enc_in, seq_len, concept_dim, recent_batch_size
    T2 = seq_len + pred_len
    R = B * E + Brb * E                 # rows of the fused activation slab
    R_PAD = _round_up(R, 8)
    KW = S + T2 + 2                     # w1 rows + w3 rows + b1 row + b3 row
    KW_PAD = _round_up(KW, 8)
    NCOLS = max(C, R_PAD)               # lane width of the parameter slab
    W13_OFF = 0                         # all block starts 8-aligned
    W2_OFF = W13_OFF + KW_PAD
    W4_OFF = W2_OFF + _round_up(C, 8)
    B24_OFF = W4_OFF + _round_up(C, 8)
    RED_OFF = B24_OFF + 8
    TOTAL_ROWS = _round_up(RED_OFF + (B + 1), 8)
    return _Layout(B=B, Brb=Brb, E=E, S=S, T2=T2, C=C,
                   R=R, R_PAD=R_PAD, KW=KW, KW_PAD=KW_PAD, NCOLS=NCOLS,
                   W13_OFF=W13_OFF, W2_OFF=W2_OFF, W4_OFF=W4_OFF,
                   B24_OFF=B24_OFF, RED_OFF=RED_OFF, TOTAL_ROWS=TOTAL_ROWS)


def pack_proceed_params(params, layout):
    """One-time (hoisted out of the hot path) packing of all constants.

    Parameter slab rows (all starts 8-aligned, NCOLS lanes):
      [W13_OFF, +KW_PAD) : [w1; w3; b1; b3] (zero-padded rows)
      [W2_OFF,  +C)      : w2
      [W4_OFF,  +C)      : w4
      [B24_OFF, +2)      : [b2; b4]
      [RED_OFF, +B+1)    : reduction matrix (per-batch mean rows + global-mean row)
    """
    L = layout
    C = L.C
    w13 = jnp.concatenate(
        [params["w1"], params["w3"], params["b1"], params["b3"]], axis=0
    ).astype(jnp.float32)                                        # (KW, C)
    w13 = jnp.pad(w13, ((0, L.KW_PAD - L.KW), (0, 0)))

    # Row b (b < B): 1/E over that batch's E rows of the mlp1 block.
    red_top = jnp.repeat(jnp.eye(L.B, dtype=jnp.float32), L.E, axis=1) / float(L.E)
    red_top = jnp.pad(red_top, ((0, 0), (0, L.R_PAD - L.B * L.E)))
    # Row B: 1/(Brb*E) over every row of the mlp2 block (flat row-mean equals
    # .mean(-2).mean(0) because every batch group has the same size E).
    nrb = L.Brb * L.E
    red_bot = jnp.zeros((1, L.R_PAD), jnp.float32)
    red_bot = red_bot.at[0, L.B * L.E: L.B * L.E + nrb].set(1.0 / float(nrb))
    red = jnp.concatenate([red_top, red_bot], axis=0)            # (B+1, R_PAD)

    pslab = jnp.zeros((L.TOTAL_ROWS, L.NCOLS), jnp.float32)
    pslab = pslab.at[L.W13_OFF:L.W13_OFF + L.KW_PAD, :C].set(w13)
    pslab = pslab.at[L.W2_OFF:L.W2_OFF + C, :C].set(params["w2"].astype(jnp.float32))
    pslab = pslab.at[L.W4_OFF:L.W4_OFF + C, :C].set(params["w4"].astype(jnp.float32))
    pslab = pslab.at[L.B24_OFF, :C].set(params["b2"][0].astype(jnp.float32))
    pslab = pslab.at[L.B24_OFF + 1, :C].set(params["b4"][0].astype(jnp.float32))
    pslab = pslab.at[L.RED_OFF:L.RED_OFF + L.B + 1, :L.R_PAD].set(red)
    return pslab


def _proceed_drift_kernel(act_ref, p_ref, drift_ref, *, layout):
    """Single invocation (no grid); whole working set (~20 KB) lives in VMEM.

    act_ref  : (R_PAD, KW_PAD) block-diagonal activation slab
               rows [0, B*E): [xt | 0 | 1 | 0], rows [B*E, R): [0 | rbt | 0 | 1]
    p_ref    : (TOTAL_ROWS, NCOLS) packed parameter slab (see pack_proceed_params)
    drift_ref: (B, C) output, one full-block store
    """
    L = layout
    C = L.C

    # Stage 1: fused mlp1/mlp2 first Linear + bias -> one MXU matmul, one GELU.
    w13 = p_ref[L.W13_OFF:L.W13_OFF + L.KW_PAD, 0:C]             # (KW_PAD, C)
    h = jnp.dot(act_ref[...], w13, preferred_element_type=jnp.float32)
    h = _gelu_exact(h)                                           # (R_PAD, C)

    # Stage 2: mean commutes with the second Linear, so reduce first.
    # pooled rows [0, B): per-batch mean over enc_in (mlp1 branch)
    # pooled row  B     : mean over (batch, enc_in)  (mlp2 branch)
    red = p_ref[L.RED_OFF:L.RED_OFF + L.B + 1, 0:L.R_PAD]        # (B+1, R_PAD)
    pooled = jnp.dot(red, h, preferred_element_type=jnp.float32)  # (B+1, C)

    # Stage 3: tiny second Linears on the pooled rows, then the drift.
    w2 = p_ref[L.W2_OFF:L.W2_OFF + C, 0:C]
    w4 = p_ref[L.W4_OFF:L.W4_OFF + C, 0:C]
    b24 = p_ref[L.B24_OFF:L.B24_OFF + 2, 0:C]                    # [b2; b4]
    concept = jnp.dot(pooled[0:L.B, :], w2,
                      preferred_element_type=jnp.float32) + b24[0:1, :]
    recent = jnp.dot(pooled[L.B:L.B + 1, :], w4,
                     preferred_element_type=jnp.float32) + b24[1:2, :]
    drift_ref[...] = concept - recent


def make_proceed_drift(layout):
    """Returns a jitted fn(x, recent_batch, pslab) -> drift (B, C)."""
    L = layout
    kernel = functools.partial(_proceed_drift_kernel, layout=L)
    vmem = pl.BlockSpec(memory_space=pltpu.MemorySpace.VMEM)
    call = pl.pallas_call(
        kernel,
        out_shape=jax.ShapeDtypeStruct((L.B, L.C), jnp.float32),
        in_specs=[vmem, vmem],
        out_specs=vmem,
    )

    @jax.jit
    def proceed_drift(x, recent_batch, pslab):
        B, S, E = x.shape
        Brb, T2, Erb = recent_batch.shape
        # Layout plumbing (the Transpose(-1,-2) of the nn.Sequential) is done
        # wrapper-side; the kernel only sees an MXU-ready slab.
        xt = jnp.swapaxes(x, -1, -2).reshape(B * E, S).astype(jnp.float32)
        rbt = jnp.swapaxes(recent_batch, -1, -2).reshape(Brb * Erb, T2)
        rbt = rbt.astype(jnp.float32)
        top = jnp.concatenate([
            xt,
            jnp.zeros((B * E, T2), jnp.float32),
            jnp.ones((B * E, 1), jnp.float32),     # b1 indicator column
            jnp.zeros((B * E, 1), jnp.float32),
        ], axis=1)
        bot = jnp.concatenate([
            jnp.zeros((Brb * Erb, S), jnp.float32),
            rbt,
            jnp.zeros((Brb * Erb, 1), jnp.float32),
            jnp.ones((Brb * Erb, 1), jnp.float32),  # b3 indicator column
        ], axis=1)
        act = jnp.concatenate([top, bot], axis=0)                  # (R, KW)
        act = jnp.pad(act, ((0, L.R_PAD - act.shape[0]),
                            (0, L.KW_PAD - act.shape[1])))
        return call(act, pslab)

    return proceed_drift


def drift_reference(x, recent_batch, params):
    """Pure-JAX reference mirroring the PyTorch module (mean AFTER 2nd Linear)."""
    def mlp(inp, w_a, b_a, w_b, b_b):
        h = jnp.swapaxes(inp, -1, -2)                 # Transpose(-1, -2)
        h = h @ w_a + b_a                             # Linear(time -> C)
        h = _gelu_exact(h)
        return h @ w_b + b_b                          # Linear(C -> C)

    concept = mlp(x, params["w1"], params["b1"][0],
                  params["w2"], params["b2"][0]).mean(-2)               # (B, C)
    rc = mlp(recent_batch, params["w3"], params["b3"][0],
             params["w4"], params["b4"][0]).mean(-2).mean(0)            # (C,)
    return concept - rc                                                 # (B, C)


def init_params(key, seq_len, pred_len, concept_dim):
    """Deterministic params; PyTorch-Linear-style uniform(-1/sqrt(fan_in), ...).

    Weights stored in (in, out) layout == torch_weight.T, biases as (1, out).
    """
    def linear(k, fan_in, fan_out):
        kw, kb = jax.random.split(k)
        bound = 1.0 / math.sqrt(fan_in)
        w = jax.random.uniform(kw, (fan_in, fan_out), jnp.float32, -bound, bound)
        b = jax.random.uniform(kb, (1, fan_out), jnp.float32, -bound, bound)
        return w, b

    k1, k2, k3, k4 = jax.random.split(key, 4)
    w1, b1 = linear(k1, seq_len, concept_dim)
    w2, b2 = linear(k2, concept_dim, concept_dim)
    w3, b3 = linear(k3, seq_len + pred_len, concept_dim)
    w4, b4 = linear(k4, concept_dim, concept_dim)
    return dict(w1=w1, b1=b1, w2=w2, b2=b2, w3=w3, b3=b3, w4=w4, b4=b4)


if __name__ == "__main__":
    # args: seq_len=16, pred_len=8, enc_in=8, concept_dim=32, batch=2
    B, S, P, E, C = 2, 16, 8, 8, 32
    Brb = 1

    key = jax.random.PRNGKey(0)
    k_param, k_x, k_rb = jax.random.split(key, 3)
    params = init_params(k_param, S, P, C)

    layout = make_layout(batch=B, enc_in=E, seq_len=S, pred_len=P,
                         concept_dim=C, recent_batch_size=Brb)
    # Constant packing hoisted out of the per-call hot path: done once here.
    pslab = jax.block_until_ready(pack_proceed_params(params, layout))
    proceed_drift = make_proceed_drift(layout)

    x = jax.random.normal(k_x, (B, S, E), jnp.float32)
    # Random recent_batch so the mlp2 path is exercised (not just its biases).
    recent_batch = jax.random.normal(k_rb, (Brb, S + P, E), jnp.float32)

    drift = jax.block_until_ready(proceed_drift(x, recent_batch, pslab))
    ref = jax.block_until_ready(drift_reference(x, recent_batch, params))
    assert drift.shape == (B, C)
    err = float(jnp.max(jnp.abs(drift - ref)))
    assert jnp.allclose(drift, ref, rtol=1e-4, atol=5e-5), f"max abs err = {err}"

    # Module's initial buffer: register_buffer('recent_batch', zeros(1, S+P, E))
    rb_zeros = jnp.zeros((Brb, S + P, E), jnp.float32)
    drift0 = jax.block_until_ready(proceed_drift(x, rb_zeros, pslab))
    ref0 = drift_reference(x, rb_zeros, params)
    err0 = float(jnp.max(jnp.abs(drift0 - ref0)))
    assert jnp.allclose(drift0, ref0, rtol=1e-4, atol=5e-5), \
        f"max abs err (zeros buffer) = {err0}"

    # TODO(synk): AdaptGenerator bottlenecks, adapter assignment, the EMA
    # recent_concept state blend/update, and the backbone forward are not
    # defined in the provided source; `drift` (the generator input) is the
    # kernel output here.
    print("KERNEL_OK")
</pallas_src>

<mosaic_0001>
module attributes {stable_mosaic.version = 11 : i64} {
  func.func @_proceed_drift_kernel(%arg0: memref<24x48xf32, #tpu.memory_space<vmem>>, %arg1: memref<128x32xf32, #tpu.memory_space<vmem>>, %arg2: memref<2x32xf32, #tpu.memory_space<vmem>>) attributes {dimension_semantics = [], scalar_prefetch = 0 : i64, scratch_operands = 0 : i64, tpu.core_type = #tpu.core_type<tc>} {
    %c0 = arith.constant 0 : index
    %c0_0 = arith.constant 0 : index
    %0 = vector.load %arg1[%c0, %c0_0] : memref<128x32xf32, #tpu.memory_space<vmem>>, vector<48x32xf32>
    %c0_1 = arith.constant 0 : index
    %c0_2 = arith.constant 0 : index
    %1 = vector.load %arg0[%c0_1, %c0_2] : memref<24x48xf32, #tpu.memory_space<vmem>>, vector<24x48xf32>
    %cst = arith.constant dense<0.000000e+00> : vector<24x32xf32>
    %2 = tpu.matmul %1, %0, %cst {dimension_numbers = #tpu.dot_dimension_numbers<[1], [0], [0], [1], [0, 0, 1, 1], [], []>} : vector<24x48xf32>, vector<48x32xf32>, vector<24x32xf32> -> vector<24x32xf32>
    %cst_3 = arith.constant 5.000000e-01 : f32
    %3 = vector.broadcast %cst_3 : f32 to vector<24x32xf32>
    %4 = arith.mulf %3, %2 : vector<24x32xf32>
    %cst_4 = arith.constant 0.707106769 : f32
    %5 = vector.broadcast %cst_4 : f32 to vector<24x32xf32>
    %6 = arith.mulf %2, %5 : vector<24x32xf32>
    %7 = math.erf %6 : vector<24x32xf32>
    %cst_5 = arith.constant 1.000000e+00 : f32
    %8 = vector.broadcast %cst_5 : f32 to vector<24x32xf32>
    %9 = arith.addf %8, %7 : vector<24x32xf32>
    %10 = arith.mulf %4, %9 : vector<24x32xf32>
    %c120 = arith.constant 120 : index
    %c0_6 = arith.constant 0 : index
    %11 = vector.load %arg1[%c120, %c0_6] : memref<128x32xf32, #tpu.memory_space<vmem>>, vector<3x24xf32>
    %cst_7 = arith.constant dense<0.000000e+00> : vector<3x32xf32>
    %12 = tpu.matmul %11, %10, %cst_7 {dimension_numbers = #tpu.dot_dimension_numbers<[1], [0], [0], [1], [0, 0, 1, 1], [], []>} : vector<3x24xf32>, vector<24x32xf32>, vector<3x32xf32> -> vector<3x32xf32>
    %c48 = arith.constant 48 : index
    %c0_8 = arith.constant 0 : index
    %13 = vector.load %arg1[%c48, %c0_8] : memref<128x32xf32, #tpu.memory_space<vmem>>, vector<32x32xf32>
    %c80 = arith.constant 80 : index
    %c0_9 = arith.constant 0 : index
    %14 = vector.load %arg1[%c80, %c0_9] : memref<128x32xf32, #tpu.memory_space<vmem>>, vector<32x32xf32>
    %c112 = arith.constant 112 : index
    %c0_10 = arith.constant 0 : index
    %15 = vector.load %arg1[%c112, %c0_10] : memref<128x32xf32, #tpu.memory_space<vmem>>, vector<2x32xf32>
    %16 = vector.extract_strided_slice %12 {offsets = [0, 0], sizes = [2, 32], strides = [1, 1]} : vector<3x32xf32> to vector<2x32xf32>
    %cst_11 = arith.constant dense<0.000000e+00> : vector<2x32xf32>
    %17 = tpu.matmul %16, %13, %cst_11 {dimension_numbers = #tpu.dot_dimension_numbers<[1], [0], [0], [1], [0, 0, 1, 1], [], []>} : vector<2x32xf32>, vector<32x32xf32>, vector<2x32xf32> -> vector<2x32xf32>
    %18 = vector.extract_strided_slice %15 {offsets = [0, 0], sizes = [1, 32], strides = [1, 1]} : vector<2x32xf32> to vector<1x32xf32>
    %19 = vector.broadcast %18 : vector<1x32xf32> to vector<2x32xf32>
    %20 = arith.addf %17, %19 : vector<2x32xf32>
    %21 = vector.extract_strided_slice %12 {offsets = [2, 0], sizes = [1, 32], strides = [1, 1]} : vector<3x32xf32> to vector<1x32xf32>
    %cst_12 = arith.constant dense<0.000000e+00> : vector<1x32xf32>
    %22 = tpu.matmul %21, %14, %cst_12 {dimension_numbers = #tpu.dot_dimension_numbers<[1], [0], [0], [1], [0, 0, 1, 1], [], []>} : vector<1x32xf32>, vector<32x32xf32>, vector<1x32xf32> -> vector<1x32xf32>
    %23 = vector.extract_strided_slice %15 {offsets = [1, 0], sizes = [1, 32], strides = [1, 1]} : vector<2x32xf32> to vector<1x32xf32>
    %24 = arith.addf %22, %23 : vector<1x32xf32>
    %25 = vector.broadcast %24 : vector<1x32xf32> to vector<2x32xf32>
    %26 = arith.subf %20, %25 : vector<2x32xf32>
    %c0_13 = arith.constant 0 : index
    %c0_14 = arith.constant 0 : index
    %27 = vector.load %arg2[%c0_13, %c0_14] : memref<2x32xf32, #tpu.memory_space<vmem>>, vector<2x32xf32>
    tpu.vector_store %arg2[%c0_13, %c0_14], %26 {strides = array<i32>} : memref<2x32xf32, #tpu.memory_space<vmem>>, vector<2x32xf32>,
    return
  }
}

</mosaic_0001>

<llo_original>
// kernel: proceed_drift.1
$region0: #{proceed_drift.1}
  #allocation0 [shape = 'u32[]', space=smem, size = 0x4, offset = 0x4, fixed_abs, tag = 'smem constant byte address 0x4 - core index']
  #allocation1 [shape = 'u32[144,128]{1,0:T(1,128)}', space=vmem, size = 0x12000, scoped, tag = 'internal scratch']
  %s0 = inlined_call_operand.vmem [shape: f32[24,48], index: 0, kind: input, shape index: {}]
  %s1 = inlined_call_operand.vmem [shape: f32[128,32], index: 1, kind: input, shape index: {}]
  %s2 = inlined_call_operand.hbm [shape: f32[2,32], index: 2, kind: output, shape index: {}]
  %s3 = sld [smem:[#allocation0]]
  $region18: #{proceed_drift.1} parent=0
    _
  %s5 = ssub.s32 1, %s3
  %s6 = scalar_select 0, %s5, %s3
  $region1: #{proceed_drift.1} parent=0
    #allocation2 [shape = 'u8[1024]{0}', space=vmem, size = 0x400, scoped, tag = 'output window, operand 0, single buffered']
    #allocation3 [shape = 's32[1]{0}', space=sflag, size = 0x4, scoped, tag = 'scoped memory for proceed_drift.1']
    %7 = vsyncpa [#allocation3], 0
    // Predicated region
    $region2: #{proceed_drift.1} parent=1 // pred_check
      _
    $region3: #{proceed_drift.1} parent=1 // pred_check_branch
      %9 = sbr.rel (0) target = $region5
    $region4: #{proceed_drift.1} parent=1 // pred_region
      _
    $region5: #{proceed_drift.1} parent=1 // pred_fallthru
      _
    // Predicated region
    $region6: #{proceed_drift.1} parent=1 // pred_check
      _
    $region7: #{proceed_drift.1} parent=1 // pred_check_branch
      %11 = sbr.rel (0) target = $region9
    $region8: #{proceed_drift.1} parent=1 // pred_region
      _
    $region9: #{proceed_drift.1} parent=1 // pred_fallthru
      _
    %v12 = vld [vmem:[%s1] sm:$0xff]
    %v13 = vld [vmem:[%s1 + $0x8] sm:$0xff]
    %v14 = vld [vmem:[%s1 + $0x10] sm:$0xff]
    %v15 = vld [vmem:[%s1 + $0x18] sm:$0xff]
    %v16 = vld [vmem:[%s1 + $0x20] sm:$0xff]
    %v17 = vld [vmem:[%s1 + $0x28] sm:$0xff]
    %v18 = vld [vmem:[%s0] sm:$0xff]
    %v19 = vld [vmem:[%s0 + $0x8] sm:$0xff]
    %v20 = vld [vmem:[%s0 + $0x10] sm:$0xff]
    %vm21 = vcmask 392192
    %v23 = vsel %vm21, %v18, 0
    %v26 = vsel %vm21, %v19, 0
    %v29 = vsel %vm21, %v20, 0
    %31 = vmatprep.subr.mxu0 0.0
    %32 = vmatpush1.msra.mxu0 %v12
    %33 = vmatprep.subr.mxu0 0.0
    %34 = vmatpush1.msra.mxu0 %v13
    %35 = vmatprep.subr.mxu0 0.0
    %36 = vmatpush1.msra.mxu0 %v14
    %37 = vmatprep.subr.mxu0 0.0
    %38 = vmatpush1.msra.mxu0 %v15
    %39 = vmatprep.subr.mxu0 0.0
    %40 = vmatpush1.msra.mxu0 %v16
    %41 = vmatprep.subr.mxu0 0.0
    %42 = vmatpush1.msra.mxu0 %v17
    %43 = vmatprep.subr.mxu0 0.0
    %44 = vmatpush1.msra.mxu0 0.0
    %45 = vmatprep.subr.mxu0 0.0
    %46 = vmatpush1.msra.mxu0 0.0
    %47 = vmatprep.subr.mxu0 0.0
    %48 = vmatpush1.msra.mxu0 0.0
    %49 = vmatprep.subr.mxu0 0.0
    %50 = vmatpush1.msra.mxu0 0.0
    %51 = vmatprep.subr.mxu0 0.0
    %52 = vmatpush1.msra.mxu0 0.0
    %53 = vmatprep.subr.mxu0 0.0
    %54 = vmatpush1.msra.mxu0 0.0
    %55 = vmatprep.subr.mxu0 0.0
    %56 = vmatpush1.msra.mxu0 0.0
    %57 = vmatprep.subr.mxu0 0.0
    %58 = vmatpush1.msra.mxu0 0.0
    %59 = vmatprep.subr.mxu0 0.0
    %60 = vmatpush1.msra.mxu0 0.0
    %61 = vmatprep.subr.mxu0 0.0
    %62 = vmatpush1.msra.mxu0 0.0
    %63 = vmatprep.subr.mxu0 0.0
    %64 = vmatpush1.msra.mxu0 0.0
    %65 = vmatprep.subr.mxu0 0.0
    %66 = vmatpush1.msra.mxu0 0.0
    %67 = vmatprep.subr.mxu0 0.0
    %68 = vmatpush1.msra.mxu0 0.0
    %69 = vmatprep.subr.mxu0 0.0
    %70 = vmatpush1.msra.mxu0 0.0
    %71 = vmatprep.subr.mxu0 0.0
    %72 = vmatpush1.msra.mxu0 0.0
    %73 = vmatprep.subr.mxu0 0.0
    %74 = vmatpush1.msra.mxu0 0.0
    %75 = vmatprep.subr.mxu0 0.0
    %76 = vmatpush1.msra.mxu0 0.0
    %77 = vmatprep.subr.mxu0 0.0
    %78 = vmatpush1.msra.mxu0 0.0
    %79 = vmatprep.subr.mxu0 0.0
    %80 = vmatpush1.msra.mxu0 0.0
    %81 = vmatprep.subr.mxu0 0.0
    %82 = vmatpush1.msra.mxu0 0.0
    %83 = vmatprep.subr.mxu0 0.0
    %84 = vmatpush1.msra.mxu0 0.0
    %85 = vmatprep.subr.mxu0 0.0
    %86 = vmatpush1.msra.mxu0 0.0
    %87 = vmatprep.subr.mxu0 0.0
    %88 = vmatpush1.msra.mxu0 0.0
    %89 = vmatprep.subr.mxu0 0.0
    %90 = vmatpush1.msra.mxu0 0.0
    %91 = vmatprep.subr.mxu0 0.0
    %92 = vmatpush1.msra.mxu0 0.0
    %93 = vmatprep.subr.mxu0 0.0
    %94 = vmatpush1.msra.mxu0 0.0
    %95 = vmatprep.mubr.f32.mxu0 0.0
    %96 = vmatmul.mubr.f32.gmra.mrb[0].mxu0 %v23
    %v97 = vpop.f32.mrb[0].mxu0
    %v98 = vadd.f32 0.0, %v97
    %v99 = vpop.f32.mrb[0].mxu0
    %100 = vmatprep.mubr.f32.mxu0 0.0
    %101 = vmatmul.mubr.f32.gmra.mrb[0].mxu0 %v26
    %v102 = vpop.f32.mrb[0].mxu0
    %v103 = vadd.f32 0.0, %v102
    %v104 = vpop.f32.mrb[0].mxu0
    %105 = vmatprep.mubr.f32.mxu0 0.0
    %106 = vmatmul.mubr.f32.gmra.mrb[0].mxu0 %v29
    %v107 = vpop.f32.mrb[0].mxu0
    %v108 = vadd.f32 0.0, %v107
    %v109 = vpop.f32.mrb[0].mxu0
    %110 = vdwg.mxu0
    %v111 = vmul.f32 %v98, 0.5
    %v112 = vmul.f32 %v103, 0.5
    %v113 = vmul.f32 %v108, 0.5
    %v114 = vmul.f32 %v98, 0.70710677
    %v115 = vmul.f32 %v103, 0.70710677
    %v116 = vmul.f32 %v108, 0.70710677
    %v117 = verf.f32.pop %v114
    %v118 = verf.f32.pop %v115
    %v119 = verf.f32.pop %v116
    %v120 = vadd.f32 %v117, 1.0
    %v121 = vadd.f32 %v118, 1.0
    %v122 = vadd.f32 %v119, 1.0
    %v123 = vmul.f32 %v111, %v120
    %v124 = vmul.f32 %v112, %v121
    %v125 = vmul.f32 %v113, %v122
    %v126 = vld [vmem:[%s1 + $0x78] sm:$0x7]
    %vm127 = vcmask 195584
    %v129 = vsel %vm127, %v126, 0
    %131 = vmatprep.subr.mxu0 0.0
    %132 = vmatpush1.msra.mxu0 %v123
    %133 = vmatprep.subr.mxu0 0.0
    %134 = vmatpush1.msra.mxu0 %v124
    %135 = vmatprep.subr.mxu0 0.0
    %136 = vmatpush1.msra.mxu0 %v125
    %137 = vmatprep.subr.mxu0 0.0
    %138 = vmatpush1.msra.mxu0 0.0
    %139 = vmatprep.subr.mxu0 0.0
    %140 = vmatpush1.msra.mxu0 0.0
    %141 = vmatprep.subr.mxu0 0.0
    %142 = vmatpush1.msra.mxu0 0.0
    %143 = vmatprep.subr.mxu0 0.0
    %144 = vmatpush1.msra.mxu0 0.0
    %145 = vmatprep.subr.mxu0 0.0
    %146 = vmatpush1.msra.mxu0 0.0
    %147 = vmatprep.subr.mxu0 0.0
    %148 = vmatpush1.msra.mxu0 0.0
    %149 = vmatprep.subr.mxu0 0.0
    %150 = vmatpush1.msra.mxu0 0.0
    %151 = vmatprep.subr.mxu0 0.0
    %152 = vmatpush1.msra.mxu0 0.0
    %153 = vmatprep.subr.mxu0 0.0
    %154 = vmatpush1.msra.mxu0 0.0
    %155 = vmatprep.subr.mxu0 0.0
    %156 = vmatpush1.msra.mxu0 0.0
    %157 = vmatprep.subr.mxu0 0.0
    %158 = vmatpush1.msra.mxu0 0.0
    %159 = vmatprep.subr.mxu0 0.0
    %160 = vmatpush1.msra.mxu0 0.0
    %161 = vmatprep.subr.mxu0 0.0
    %162 = vmatpush1.msra.mxu0 0.0
    %163 = vmatprep.subr.mxu0 0.0
    %164 = vmatpush1.msra.mxu0 0.0
    %165 = vmatprep.subr.mxu0 0.0
    %166 = vmatpush1.msra.mxu0 0.0
    %167 = vmatprep.subr.mxu0 0.0
    %168 = vmatpush1.msra.mxu0 0.0
    %169 = vmatprep.subr.mxu0 0.0
    %170 = vmatpush1.msra.mxu0 0.0
    %171 = vmatprep.subr.mxu0 0.0
    %172 = vmatpush1.msra.mxu0 0.0
    %173 = vmatprep.subr.mxu0 0.0
    %174 = vmatpush1.msra.mxu0 0.0
    %175 = vmatprep.subr.mxu0 0.0
    %176 = vmatpush1.msra.mxu0 0.0
    %177 = vmatprep.subr.mxu0 0.0
    %178 = vmatpush1.msra.mxu0 0.0
    %179 = vmatprep.subr.mxu0 0.0
    %180 = vmatpush1.msra.mxu0 0.0
    %181 = vmatprep.subr.mxu0 0.0
    %182 = vmatpush1.msra.mxu0 0.0
    %183 = vmatprep.subr.mxu0 0.0
    %184 = vmatpush1.msra.mxu0 0.0
    %185 = vmatprep.subr.mxu0 0.0
    %186 = vmatpush1.msra.mxu0 0.0
    %187 = vmatprep.subr.mxu0 0.0
    %188 = vmatpush1.msra.mxu0 0.0
    %189 = vmatprep.subr.mxu0 0.0
    %190 = vmatpush1.msra.mxu0 0.0
    %191 = vmatprep.subr.mxu0 0.0
    %192 = vmatpush1.msra.mxu0 0.0
    %193 = vmatprep.subr.mxu0 0.0
    %194 = vmatpush1.msra.mxu0 0.0
    %195 = vmatprep.mubr.f32.mxu0 0.0
    %196 = vmatmul.mubr.f32.gmra.mrb[0].mxu0 %v129
    %v197 = vpop.f32.mrb[0].mxu0
    %v198 = vadd.f32 0.0, %v197
    %v199 = vpop.f32.mrb[0].mxu0
    %200 = vdwg.mxu0
    %v201 = vld [vmem:[%s1 + $0x30] sm:$0xff]
    %v202 = vld [vmem:[%s1 + $0x38] sm:$0xff]
    %v203 = vld [vmem:[%s1 + $0x40] sm:$0xff]
    %v204 = vld [vmem:[%s1 + $0x48] sm:$0xff]
    %v205 = vld [vmem:[%s1 + $0x50] sm:$0xff]
    %v206 = vld [vmem:[%s1 + $0x58] sm:$0xff]
    %v207 = vld [vmem:[%s1 + $0x60] sm:$0xff]
    %v208 = vld [vmem:[%s1 + $0x68] sm:$0xff]
    %v209 = vld [vmem:[%s1 + $0x70] sm:$0x3]
    %v210 = vlaneseq
    %v211 = vshrl.u32 %v210, 7
    %v212 = vsub.s32 0, %v211
    %v213 = vrot.slane %v209, %v212
    %vm214 = vcmask 261120
    %v216 = vsel %vm214, %v198, 0
    %218 = vmatprep.subr.mxu0 0.0
    %219 = vmatpush1.msra.mxu0 %v201
    %220 = vmatprep.subr.mxu0 0.0
    %221 = vmatpush1.msra.mxu0 %v202
    %222 = vmatprep.subr.mxu0 0.0
    %223 = vmatpush1.msra.mxu0 %v203
    %224 = vmatprep.subr.mxu0 0.0
    %225 = vmatpush1.msra.mxu0 %v204
    %226 = vmatprep.subr.mxu0 0.0
    %227 = vmatpush1.msra.mxu0 0.0
    %228 = vmatprep.subr.mxu0 0.0
    %229 = vmatpush1.msra.mxu0 0.0
    %230 = vmatprep.subr.mxu0 0.0
    %231 = vmatpush1.msra.mxu0 0.0
    %232 = vmatprep.subr.mxu0 0.0
    %233 = vmatpush1.msra.mxu0 0.0
    %234 = vmatprep.subr.mxu0 0.0
    %235 = vmatpush1.msra.mxu0 0.0
    %236 = vmatprep.subr.mxu0 0.0
    %237 = vmatpush1.msra.mxu0 0.0
    %238 = vmatprep.subr.mxu0 0.0
    %239 = vmatpush1.msra.mxu0 0.0
    %240 = vmatprep.subr.mxu0 0.0
    %241 = vmatpush1.msra.mxu0 0.0
    %242 = vmatprep.subr.mxu0 0.0
    %243 = vmatpush1.msra.mxu0 0.0
    %244 = vmatprep.subr.mxu0 0.0
    %245 = vmatpush1.msra.mxu0 0.0
    %246 = vmatprep.subr.mxu0 0.0
    %247 = vmatpush1.msra.mxu0 0.0
    %248 = vmatprep.subr.mxu0 0.0
    %249 = vmatpush1.msra.mxu0 0.0
    %250 = vmatprep.subr.mxu0 0.0
    %251 = vmatpush1.msra.mxu0 0.0
    %252 = vmatprep.subr.mxu0 0.0
    %253 = vmatpush1.msra.mxu0 0.0
    %254 = vmatprep.subr.mxu0 0.0
    %255 = vmatpush1.msra.mxu0 0.0
    %256 = vmatprep.subr.mxu0 0.0
    %257 = vmatpush1.msra.mxu0 0.0
    %258 = vmatprep.subr.mxu0 0.0
    %259 = vmatpush1.msra.mxu0 0.0
    %260 = vmatprep.subr.mxu0 0.0
    %261 = vmatpush1.msra.mxu0 0.0
    %262 = vmatprep.subr.mxu0 0.0
    %263 = vmatpush1.msra.mxu0 0.0
    %264 = vmatprep.subr.mxu0 0.0
    %265 = vmatpush1.msra.mxu0 0.0
    %266 = vmatprep.subr.mxu0 0.0
    %267 = vmatpush1.msra.mxu0 0.0
    %268 = vmatprep.subr.mxu0 0.0
    %269 = vmatpush1.msra.mxu0 0.0
    %270 = vmatprep.subr.mxu0 0.0
    %271 = vmatpush1.msra.mxu0 0.0
    %272 = vmatprep.subr.mxu0 0.0
    %273 = vmatpush1.msra.mxu0 0.0
    %274 = vmatprep.subr.mxu0 0.0
    %275 = vmatpush1.msra.mxu0 0.0
    %276 = vmatprep.subr.mxu0 0.0
    %277 = vmatpush1.msra.mxu0 0.0
    %278 = vmatprep.subr.mxu0 0.0
    %279 = vmatpush1.msra.mxu0 0.0
    %280 = vmatprep.subr.mxu0 0.0
    %281 = vmatpush1.msra.mxu0 0.0
    %282 = vmatprep.mubr.f32.mxu0 0.0
    %283 = vmatmul.mubr.f32.gmra.mrb[0].mxu0 %v216
    %v284 = vpop.f32.mrb[0].mxu0
    %v285 = vadd.f32 %v213, %v284
    %v286 = vpop.f32.mrb[0].mxu0
    %287 = vdwg.mxu0
    %v288 = vrot.slane %v198, 2
    %v290 = vrot.slane %v209, 1
    %v292 = vsel %vm214, %v288, 0
    %294 = vmatprep.subr.mxu0 0.0
    %295 = vmatpush1.msra.mxu0 %v205
    %296 = vmatprep.subr.mxu0 0.0
    %297 = vmatpush1.msra.mxu0 %v206
    %298 = vmatprep.subr.mxu0 0.0
    %299 = vmatpush1.msra.mxu0 %v207
    %300 = vmatprep.subr.mxu0 0.0
    %301 = vmatpush1.msra.mxu0 %v208
    %302 = vmatprep.subr.mxu0 0.0
    %303 = vmatpush1.msra.mxu0 0.0
    %304 = vmatprep.subr.mxu0 0.0
    %305 = vmatpush1.msra.mxu0 0.0
    %306 = vmatprep.subr.mxu0 0.0
    %307 = vmatpush1.msra.mxu0 0.0
    %308 = vmatprep.subr.mxu0 0.0
    %309 = vmatpush1.msra.mxu0 0.0
    %310 = vmatprep.subr.mxu0 0.0
    %311 = vmatpush1.msra.mxu0 0.0
    %312 = vmatprep.subr.mxu0 0.0
    %313 = vmatpush1.msra.mxu0 0.0
    %314 = vmatprep.subr.mxu0 0.0
    %315 = vmatpush1.msra.mxu0 0.0
    %316 = vmatprep.subr.mxu0 0.0
    %317 = vmatpush1.msra.mxu0 0.0
    %318 = vmatprep.subr.mxu0 0.0
    %319 = vmatpush1.msra.mxu0 0.0
    %320 = vmatprep.subr.mxu0 0.0
    %321 = vmatpush1.msra.mxu0 0.0
    %322 = vmatprep.subr.mxu0 0.0
    %323 = vmatpush1.msra.mxu0 0.0
    %324 = vmatprep.subr.mxu0 0.0
    %325 = vmatpush1.msra.mxu0 0.0
    %326 = vmatprep.subr.mxu0 0.0
    %327 = vmatpush1.msra.mxu0 0.0
    %328 = vmatprep.subr.mxu0 0.0
    %329 = vmatpush1.msra.mxu0 0.0
    %330 = vmatprep.subr.mxu0 0.0
    %331 = vmatpush1.msra.mxu0 0.0
    %332 = vmatprep.subr.mxu0 0.0
    %333 = vmatpush1.msra.mxu0 0.0
    %334 = vmatprep.subr.mxu0 0.0
    %335 = vmatpush1.msra.mxu0 0.0
    %336 = vmatprep.subr.mxu0 0.0
    %337 = vmatpush1.msra.mxu0 0.0
    %338 = vmatprep.subr.mxu0 0.0
    %339 = vmatpush1.msra.mxu0 0.0
    %340 = vmatprep.subr.mxu0 0.0
    %341 = vmatpush1.msra.mxu0 0.0
    %342 = vmatprep.subr.mxu0 0.0
    %343 = vmatpush1.msra.mxu0 0.0
    %344 = vmatprep.subr.mxu0 0.0
    %345 = vmatpush1.msra.mxu0 0.0
    %346 = vmatprep.subr.mxu0 0.0
    %347 = vmatpush1.msra.mxu0 0.0
    %348 = vmatprep.subr.mxu0 0.0
    %349 = vmatpush1.msra.mxu0 0.0
    %350 = vmatprep.subr.mxu0 0.0
    %351 = vmatpush1.msra.mxu0 0.0
    %352 = vmatprep.subr.mxu0 0.0
    %353 = vmatpush1.msra.mxu0 0.0
    %354 = vmatprep.subr.mxu0 0.0
    %355 = vmatpush1.msra.mxu0 0.0
    %356 = vmatprep.subr.mxu0 0.0
    %357 = vmatpush1.msra.mxu0 0.0
    %358 = vmatprep.mubr.f32.mxu0 0.0
    %359 = vmatmul.mubr.f32.gmra.mrb[0].mxu0 %v292
    %v360 = vpop.f32.mrb[0].mxu0
    %v361 = vadd.f32 %v290, %v360
    %v362 = vpop.f32.mrb[0].mxu0
    %363 = vdwg.mxu0
    %v364 = vlaneseq
    %v365 = vshrl.u32 %v364, 7
    %v366 = vsub.s32 0, %v365
    %v367 = vrot.slane %v361, %v366
    %v368 = vsub.f32 %v285, %v367
    %vm369 = vcmask 254976
    %370 = vst.msk [vmem:[#allocation2] sm:$0x3] %vm369, %v368
    // Predicated region
    $region10: #{proceed_drift.1} parent=1 // pred_check
      _
    $region11: #{proceed_drift.1} parent=1 // pred_check_branch
      %372 = sbr.rel (0) target = $region13
    $region12: #{proceed_drift.1} parent=1 // pred_region
      %s374 = ssub.s32 32, 32
      %375 = vsyncadd [#allocation3], %s374
      %s377 = sshll.u32 [#allocation2], 4
      %s378 = int_to_ptr.vmem [resolvable:$true] %s377
      %380 = dma.vmem_to_hbm [thread:$0]  %s378, 32, %s2, [#allocation3]
    $region13: #{proceed_drift.1} parent=1 // pred_fallthru
      _
    // Predicated region
    $region14: #{proceed_drift.1} parent=1 // pred_check
      _
    $region15: #{proceed_drift.1} parent=1 // pred_check_branch
      %382 = sbr.rel (0) target = $region17
    $region16: #{proceed_drift.1} parent=1 // pred_region
      %383 = dma.done [#allocation3], 32
    $region17: #{proceed_drift.1} parent=1 // pred_fallthru
      _
    %384 = vsyncpa [#allocation3], 1

</llo_original>
